<compile_context>
chip_gen: v7x
topology: tpu7x:2x2x1
jax: 0.10.0
libtpu: 0.0.40
codegen_flags: <defaults>
</compile_context>

<pallas_src>
import functools

import jax
import jax.numpy as jnp
from jax.experimental import pallas as pl
from jax.experimental.pallas import tpu as pltpu


_VMEM_LIMIT = 48 * 1024 * 1024  # fits v7x's 64 MiB/TC with headroom; v5e/v6e have 128 MiB


def _round_up(v, m):
    return (v + m - 1) // m * m


def _cparams(semantics):
    return pltpu.CompilerParams(dimension_semantics=semantics,
                                vmem_limit_bytes=_VMEM_LIMIT)


# ----------------------------------------------------------------------------
# Pallas kernels
# ----------------------------------------------------------------------------
def _accum_taps(get_win, w_ref, groups, mp, cin):
    """Sum of grouped implicit-GEMM taps into a local f32 accumulator.

    groups is a static tuple of tap-coordinate tuples; each group's windows are
    concatenated along K so one matmul covers up to 256 contraction elements.
    """
    acc = None
    for g, taps in enumerate(groups):
        if len(taps) == 1:
            a = get_win(*taps[0]).reshape(mp, cin)
        else:
            a = jnp.concatenate(
                [get_win(di, dj).reshape(mp, cin) for (di, dj) in taps], axis=-1)
        part = jnp.dot(a, w_ref[g], preferred_element_type=jnp.float32)
        acc = part if acc is None else acc + part
    return acc


def _store_with_stats(acc, y_ref, sum_ref, sq_ref, oh, ow, owp):
    """Single store of the accumulator + per-channel sum / sumsq side outputs."""
    y_ref[...] = acc.astype(y_ref.dtype)
    if owp != ow:
        a3 = acc.reshape(oh, owp, -1)
        col = jax.lax.broadcasted_iota(jnp.int32, (1, owp, 1), 1)
        a3 = jnp.where(col < ow, a3, 0.0)
        sum_ref[...] = jnp.sum(jnp.sum(a3, axis=0), axis=0, keepdims=True)
        sq_ref[...] = jnp.sum(jnp.sum(a3 * a3, axis=0), axis=0, keepdims=True)
    else:
        sum_ref[...] = jnp.sum(acc, axis=0, keepdims=True)
        sq_ref[...] = jnp.sum(acc * acc, axis=0, keepdims=True)


def _conv_kernel(x_ref, w_ref, y_ref, sum_ref, sq_ref, *,
                 groups, stride, oh, ow, owp):
    """Implicit-GEMM conv for one image (bf16 in/out) + BN statistics.

    x_ref : (stride*stride, hq, wq, cin) phase-split, zero-padded input (bf16)
    w_ref : (n_groups, gs*cin, cout_tile) grouped weights (bf16)
    y_ref : (oh*owp, cout_tile) conv output (bf16); cols >= ow are padding
    """
    mp = oh * owp
    cin = x_ref.shape[-1]

    def get_win(di, dj):
        ph, hb = di % stride, di // stride
        pw, wb = dj % stride, dj // stride
        return x_ref[ph * stride + pw, hb:hb + oh, wb:wb + owp, :]

    acc = _accum_taps(get_win, w_ref, groups, mp, cin)
    _store_with_stats(acc, y_ref, sum_ref, sq_ref, oh, ow, owp)


def _conv_bnrelu_kernel(x_ref, sc_ref, sh_ref, w_ref, y_ref, sum_ref, sq_ref,
                        xb_ref, *, groups, oh, ow, owp, pad, vh, vw):
    """3x3 stride-1 conv whose input is a raw pre-BN activation.

    The producer's BN scale/shift + ReLU (and the zero-padding mask) are applied
    once to the resident block in VMEM scratch, then the tap loop runs on it.
    """
    # Fill the normalized-input scratch once per image (cout-tile axis is the
    # inner, "arbitrary" grid axis, so j==0 always precedes the other tiles).
    @pl.when(pl.program_id(1) == 0)
    def _():
        hq, wq, cin = xb_ref.shape
        sc = sc_ref[...].reshape(1, 1, cin)
        sh = sh_ref[...].reshape(1, 1, cin)
        xb = x_ref[0].astype(jnp.float32) * sc + sh
        xb = jnp.maximum(xb, 0.0)
        row = jax.lax.broadcasted_iota(jnp.int32, (hq, wq, 1), 0)
        col = jax.lax.broadcasted_iota(jnp.int32, (hq, wq, 1), 1)
        valid = ((row >= pad) & (row < pad + vh) &
                 (col >= pad) & (col < pad + vw))
        xb_ref[...] = jnp.where(valid, xb, 0.0).astype(xb_ref.dtype)

    mp = oh * owp
    cin = xb_ref.shape[-1]

    def get_win(di, dj):
        return xb_ref[di:di + oh, dj:dj + owp, :]

    acc = _accum_taps(get_win, w_ref, groups, mp, cin)
    _store_with_stats(acc, y_ref, sum_ref, sq_ref, oh, ow, owp)


def _maxpool_kernel(x_ref, o_ref, *, k, stride, oh, owp):
    """3x3/s2 max-pool; running max kept in registers, single store."""
    mp, c = o_ref.shape
    m = None
    for di in range(k):
        for dj in range(k):
            ph, hb = di % stride, di // stride
            pw, wb = dj % stride, dj // stride
            win = x_ref[ph * stride + pw, hb:hb + oh, wb:wb + owp, :]
            win = win.reshape(mp, c)
            m = win if m is None else jnp.maximum(m, win)
    o_ref[...] = m


def _bn_act_kernel(y_ref, sc_ref, sh_ref, o_ref):
    out = y_ref[...].astype(jnp.float32) * sc_ref[...] + sh_ref[...]
    o_ref[...] = jnp.maximum(out, 0.0).astype(o_ref.dtype)


def _bn_res_act_kernel(y_ref, sc_ref, sh_ref, r_ref, o_ref):
    out = (y_ref[...].astype(jnp.float32) * sc_ref[...] + sh_ref[...]
           + r_ref[...].astype(jnp.float32))
    o_ref[...] = jnp.maximum(out, 0.0).astype(o_ref.dtype)


def _bn_dsres_act_kernel(y_ref, sc_ref, sh_ref, r_ref, scd_ref, shd_ref, o_ref):
    # downsample-branch BN is fused here (no separate HBM pass for it)
    res = r_ref[...].astype(jnp.float32) * scd_ref[...] + shd_ref[...]
    out = y_ref[...].astype(jnp.float32) * sc_ref[...] + sh_ref[...] + res
    o_ref[...] = jnp.maximum(out, 0.0).astype(o_ref.dtype)


def _avgpool_fc_kernel(x_ref, w_ref, b_ref, o_ref, *, inv_hw):
    pooled = jnp.sum(x_ref[...].astype(jnp.float32), axis=1) * inv_hw   # (n, c)
    o_ref[...] = jnp.dot(pooled, w_ref[...],
                         preferred_element_type=jnp.float32) + b_ref[...]


# ----------------------------------------------------------------------------
# Glue / wrappers
# ----------------------------------------------------------------------------
def _phase_split(x, kh, kw, stride, pad, pad_value):
    """Pad and split H/W into stride phases (no tap expansion).

    Returns xps of shape (N, stride*stride, hq, wq, C) with
      xps[n, ph*stride + pw, i, j, c] == x_padded[n, stride*i + ph, stride*j + pw, c]
    plus (oh, ow, owp) where owp = ow rounded up to a multiple of 8.
    """
    n, h, w, c = x.shape
    s = stride
    oh = (h + 2 * pad - kh) // s + 1
    ow = (w + 2 * pad - kw) // s + 1
    owp = _round_up(ow, 8)
    hq = oh + (kh - 1) // s
    wq = owp + (kw - 1) // s
    pad_b = s * hq - h - pad
    pad_r = s * wq - w - pad
    assert pad_b >= 0 and pad_r >= 0
    xp = jnp.pad(x, ((0, 0), (pad, pad_b), (pad, pad_r), (0, 0)),
                 constant_values=pad_value)
    xps = xp.reshape(n, hq, s, wq, s, c).transpose(0, 2, 4, 1, 3, 5)
    return xps.reshape(n, s * s, hq, wq, c), oh, ow, owp


def _im2col(x, kh, kw, stride, pad):
    """im2col in glue for the cin=3 stem: output channels ordered tap-major."""
    n, h, w, c = x.shape
    oh = (h + 2 * pad - kh) // stride + 1
    ow = (w + 2 * pad - kw) // stride + 1
    xp = jnp.pad(x, ((0, 0), (pad, pad), (pad, pad), (0, 0)))
    cols = []
    for di in range(kh):
        for dj in range(kw):
            cols.append(xp[:, di:di + stride * (oh - 1) + 1:stride,
                           dj:dj + stride * (ow - 1) + 1:stride, :])
    return jnp.concatenate(cols, axis=-1), oh, ow


def conv2d_with_stats(x, wg, groups, kh, kw, stride, pad):
    """Bias-free NHWC conv (bf16); returns per-channel (sum, sumsq, count)."""
    n = x.shape[0]
    cout = wg.shape[-1]
    xps, oh, ow, owp = _phase_split(x, kh, kw, stride, pad, 0.0)
    _, pp, hq, wq, cin = xps.shape
    mp = oh * owp
    tc = min(cout, 128)
    nct = cout // tc
    kern = functools.partial(_conv_kernel, groups=groups, stride=stride,
                             oh=oh, ow=ow, owp=owp)
    y_all, csum, csq = pl.pallas_call(
        kern,
        out_shape=(jax.ShapeDtypeStruct((n, mp, cout), jnp.bfloat16),
                   jax.ShapeDtypeStruct((n, 1, cout), jnp.float32),
                   jax.ShapeDtypeStruct((n, 1, cout), jnp.float32)),
        grid=(n, nct),
        in_specs=[pl.BlockSpec((None, pp, hq, wq, cin),
                               lambda i, j: (i, 0, 0, 0, 0)),
                  pl.BlockSpec((wg.shape[0], wg.shape[1], tc),
                               lambda i, j: (0, 0, j))],
        out_specs=(pl.BlockSpec((None, mp, tc), lambda i, j: (i, 0, j)),
                   pl.BlockSpec((None, 1, tc), lambda i, j: (i, 0, j)),
                   pl.BlockSpec((None, 1, tc), lambda i, j: (i, 0, j))),
        compiler_params=_cparams(("parallel", "arbitrary")),
    )(xps, wg)
    y = y_all.reshape(n, oh, owp, cout)[:, :, :ow, :]
    stats = (jnp.sum(csum, axis=0), jnp.sum(csq, axis=0), n * oh * ow)
    return y, stats


def conv2d_bnrelu_with_stats(y_in, scale, shift, wg, groups, pad=1):
    """3x3/s1 conv consuming a *raw* pre-BN activation; BN+ReLU fused in-kernel."""
    n, vh, vw, cin = y_in.shape
    cout = wg.shape[-1]
    xps, oh, ow, owp = _phase_split(y_in, 3, 3, 1, pad, 0.0)
    _, pp, hq, wq, _ = xps.shape
    mp = oh * owp
    tc = min(cout, 128)
    nct = cout // tc
    kern = functools.partial(_conv_bnrelu_kernel, groups=groups, oh=oh, ow=ow,
                             owp=owp, pad=pad, vh=vh, vw=vw)
    y_all, csum, csq = pl.pallas_call(
        kern,
        out_shape=(jax.ShapeDtypeStruct((n, mp, cout), jnp.bfloat16),
                   jax.ShapeDtypeStruct((n, 1, cout), jnp.float32),
                   jax.ShapeDtypeStruct((n, 1, cout), jnp.float32)),
        grid=(n, nct),
        in_specs=[pl.BlockSpec((None, pp, hq, wq, cin),
                               lambda i, j: (i, 0, 0, 0, 0)),
                  pl.BlockSpec((1, cin), lambda i, j: (0, 0)),
                  pl.BlockSpec((1, cin), lambda i, j: (0, 0)),
                  pl.BlockSpec((wg.shape[0], wg.shape[1], tc),
                               lambda i, j: (0, 0, j))],
        out_specs=(pl.BlockSpec((None, mp, tc), lambda i, j: (i, 0, j)),
                   pl.BlockSpec((None, 1, tc), lambda i, j: (i, 0, j)),
                   pl.BlockSpec((None, 1, tc), lambda i, j: (i, 0, j))),
        scratch_shapes=[pltpu.VMEM((hq, wq, cin), jnp.bfloat16)],
        compiler_params=_cparams(("parallel", "arbitrary")),
    )(xps, scale, shift, wg)
    y = y_all.reshape(n, oh, owp, cout)[:, :, :ow, :]
    stats = (jnp.sum(csum, axis=0), jnp.sum(csq, axis=0), n * oh * ow)
    return y, stats


def _bn_scale_shift(stats, gamma, beta):
    csum, csq, count = stats
    inv_n = 1.0 / float(count)
    mean = csum * inv_n
    var = jnp.maximum(csq * inv_n - mean * mean, 0.0)
    scale = gamma.reshape(1, -1) * jax.lax.rsqrt(var + 1e-5)
    shift = beta.reshape(1, -1) - mean * scale
    return scale, shift


def bn_relu_apply(y, scale, shift, residual=None, ds_scale=None, ds_shift=None):
    """BN scale/shift (+ optional residual with its own fused BN) + ReLU."""
    n, oh, ow, c = y.shape
    m = n * oh * ow
    y2 = y.reshape(m, c)
    r2 = residual.reshape(m, c) if residual is not None else None

    # Lane-dense folding: (M, 64) -> (M/2, 128) so stores are unmasked.
    fold = 1
    if c < 128 and 128 % c == 0 and m % (128 // c) == 0:
        fold = 128 // c
    if fold > 1:
        y2 = y2.reshape(m // fold, c * fold)
        if r2 is not None:
            r2 = r2.reshape(m // fold, c * fold)
        scale = jnp.tile(scale, (1, fold))
        shift = jnp.tile(shift, (1, fold))
        if ds_scale is not None:
            ds_scale = jnp.tile(ds_scale, (1, fold))
            ds_shift = jnp.tile(ds_shift, (1, fold))

    mm, cc = y2.shape
    tm = mm
    for cand in (1024, 512, 256, 128):
        if mm % cand == 0:
            tm = cand
            break
    grid = (mm // tm,)
    row_spec = pl.BlockSpec((tm, cc), lambda i: (i, 0))
    par_spec = pl.BlockSpec((1, cc), lambda i: (0, 0))
    out_shape = jax.ShapeDtypeStruct((mm, cc), jnp.bfloat16)
    cp = _cparams(("parallel",))

    if r2 is None:
        out = pl.pallas_call(_bn_act_kernel, out_shape=out_shape, grid=grid,
                             in_specs=[row_spec, par_spec, par_spec],
                             out_specs=row_spec, compiler_params=cp,
                             )(y2, scale, shift)
    elif ds_scale is None:
        out = pl.pallas_call(_bn_res_act_kernel, out_shape=out_shape, grid=grid,
                             in_specs=[row_spec, par_spec, par_spec, row_spec],
                             out_specs=row_spec, compiler_params=cp,
                             )(y2, scale, shift, r2)
    else:
        out = pl.pallas_call(_bn_dsres_act_kernel, out_shape=out_shape,
                             grid=grid,
                             in_specs=[row_spec, par_spec, par_spec, row_spec,
                                       par_spec, par_spec],
                             out_specs=row_spec, compiler_params=cp,
                             )(y2, scale, shift, r2, ds_scale, ds_shift)
    return out.reshape(n, oh, ow, c)


def maxpool2d(x, k=3, stride=2, pad=1):
    n, h, w, c = x.shape
    # input is post-ReLU (>= 0), so zero padding is equivalent to -inf padding
    xps, oh, ow, owp = _phase_split(x, k, k, stride, pad, 0.0)
    _, pp, hq, wq, _ = xps.shape
    mp = oh * owp
    out = pl.pallas_call(
        functools.partial(_maxpool_kernel, k=k, stride=stride, oh=oh, owp=owp),
        out_shape=jax.ShapeDtypeStruct((n, mp, c), x.dtype),
        grid=(n,),
        in_specs=[pl.BlockSpec((None, pp, hq, wq, c),
                               lambda i: (i, 0, 0, 0, 0))],
        out_specs=pl.BlockSpec((None, mp, c), lambda i: (i, 0, 0)),
        compiler_params=_cparams(("parallel",)),
    )(xps)
    return out.reshape(n, oh, owp, c)[:, :, :ow, :]


def avgpool_fc(x, fc_w, fc_b):
    """AdaptiveAvgPool2d((1,1)) + flatten + Linear, all images stacked in M."""
    n, h, w, c = x.shape
    hw = h * w
    ncls = fc_w.shape[1]
    nclp = _round_up(ncls, 128)
    wpad = jnp.pad(fc_w, ((0, 0), (0, nclp - ncls)))
    bpad = jnp.pad(fc_b, (0, nclp - ncls)).reshape(1, nclp)
    xr = x.reshape(n, hw, c)
    out = pl.pallas_call(
        functools.partial(_avgpool_fc_kernel, inv_hw=1.0 / hw),
        out_shape=jax.ShapeDtypeStruct((n, nclp), jnp.float32),
        grid=(1,),
        in_specs=[pl.BlockSpec((n, hw, c), lambda i: (0, 0, 0)),
                  pl.BlockSpec((c, nclp), lambda i: (0, 0)),
                  pl.BlockSpec((1, nclp), lambda i: (0, 0))],
        out_specs=pl.BlockSpec((n, nclp), lambda i: (0, 0)),
        compiler_params=_cparams(("arbitrary",)),
    )(xr, wpad, bpad)
    return out[:, :ncls]


# ----------------------------------------------------------------------------
# Parameter construction (deterministic, mirrors ResNet.__init__ shapes)
# ----------------------------------------------------------------------------
def _kaiming(key, kh, kw, cin, cout):
    # kaiming_normal_(mode='fan_out', nonlinearity='relu'): std = sqrt(2 / fan_out)
    std = (2.0 / (cout * kh * kw)) ** 0.5
    return std * jax.random.normal(key, (kh, kw, cin, cout), jnp.float32)


def _group_conv_weights(w):
    """(kh, kw, cin, cout) f32 -> grouped bf16 weights (n_groups, gs*cin, cout)
    plus the static tap-coordinate groups (K packed up to 256 per matmul)."""
    kh, kw, cin, cout = w.shape
    taps = [(di, dj) for di in range(kh) for dj in range(kw)]
    gs = min(len(taps), max(1, 256 // cin))
    npad = (-len(taps)) % gs
    wt = w.reshape(len(taps), cin, cout)
    if npad:
        wt = jnp.concatenate([wt, jnp.zeros((npad, cin, cout), w.dtype)], axis=0)
        taps = taps + [taps[-1]] * npad          # duplicate taps, zero weights
    ngroups = len(taps) // gs
    wg = wt.reshape(ngroups, gs * cin, cout).astype(jnp.bfloat16)
    groups = tuple(tuple(taps[g * gs:(g + 1) * gs]) for g in range(ngroups))
    return wg, groups


def _bn_params(c):
    return {'gamma': jnp.ones((c,), jnp.float32),
            'beta': jnp.zeros((c,), jnp.float32)}


def _make_basic_block_params(key, inplanes, planes, stride):
    k1, k2, k3 = jax.random.split(key, 3)
    w1, g1 = _group_conv_weights(_kaiming(k1, 3, 3, inplanes, planes))
    w2, g2 = _group_conv_weights(_kaiming(k2, 3, 3, planes, planes))
    p = {'stride': stride,
         'conv1_w': w1, 'conv1_groups': g1, 'bn1': _bn_params(planes),
         'conv2_w': w2, 'conv2_groups': g2, 'bn2': _bn_params(planes)}
    if stride != 1 or inplanes != planes:        # BasicBlock.expansion == 1
        wd, gd = _group_conv_weights(_kaiming(k3, 1, 1, inplanes, planes))
        p['downsample'] = {'w': wd, 'groups': gd, 'bn': _bn_params(planes)}
    return p


def make_resnet_params(key, layers=(1, 1, 1, 1), num_classes=10, in_channels=3):
    keys = jax.random.split(key, 8)
    # stem stored as a 1x1 conv with cin = 7*7*in_channels (matches im2col order)
    w7 = _kaiming(keys[0], 7, 7, in_channels, 64)
    cw, cg = _group_conv_weights(w7.reshape(1, 1, 7 * 7 * in_channels, 64))
    params = {'conv1_w': cw, 'conv1_groups': cg, 'bn1': _bn_params(64)}
    inplanes = 64
    plane_list = (64, 128, 256, 512)
    strides = (1, 2, 2, 2)
    for li in range(4):
        nblocks = layers[li]
        bkeys = jax.random.split(keys[1 + li], nblocks)
        blocks = []
        for bi in range(nblocks):
            s = strides[li] if bi == 0 else 1
            blocks.append(_make_basic_block_params(bkeys[bi], inplanes,
                                                   plane_list[li], s))
            inplanes = plane_list[li]
        params['layer%d' % (li + 1)] = blocks
    # nn.Linear default init: U(-1/sqrt(fan_in), 1/sqrt(fan_in))
    fan_in = 512
    bound = 1.0 / (fan_in ** 0.5)
    params['fc_w'] = jax.random.uniform(keys[5], (fan_in, num_classes),
                                        jnp.float32, -bound, bound)
    params['fc_b'] = jax.random.uniform(keys[6], (num_classes,),
                                        jnp.float32, -bound, bound)
    return params


# ----------------------------------------------------------------------------
# Forward pass (mirrors ResNet.forward with BasicBlock)
# ----------------------------------------------------------------------------
def basic_block_forward(x, p):
    stride = p['stride']
    # conv1 (raw output + BN statistics)
    y1, st1 = conv2d_with_stats(x, p['conv1_w'], p['conv1_groups'],
                                3, 3, stride, 1)
    sc1, sh1 = _bn_scale_shift(st1, p['bn1']['gamma'], p['bn1']['beta'])
    # conv2 with bn1 + ReLU fused into its input stage (no HBM pass for bn1)
    y2, st2 = conv2d_bnrelu_with_stats(y1, sc1, sh1, p['conv2_w'],
                                       p['conv2_groups'], pad=1)
    sc2, sh2 = _bn_scale_shift(st2, p['bn2']['gamma'], p['bn2']['beta'])
    if 'downsample' in p:
        # 1x1 stride-s conv == spatial subsample (glue) + 1x1 GEMM
        xs = x[:, ::stride, ::stride, :] if stride > 1 else x
        yd, std = conv2d_with_stats(xs, p['downsample']['w'],
                                    p['downsample']['groups'], 1, 1, 1, 0)
        scd, shd = _bn_scale_shift(std, p['downsample']['bn']['gamma'],
                                   p['downsample']['bn']['beta'])
        return bn_relu_apply(y2, sc2, sh2, residual=yd,
                             ds_scale=scd, ds_shift=shd)
    return bn_relu_apply(y2, sc2, sh2, residual=x)


def resnet_forward(params, x_nchw, out_keys=('block3', 'block5')):
    # accepts NCHW (PyTorch), computes in NHWC bf16, returns endpoints in NCHW f32.
    x = jnp.transpose(x_nchw, (0, 2, 3, 1)).astype(jnp.bfloat16)
    endpoints = {}

    # stem: 7x7/s2 conv folded to a K=147 GEMM (im2col) + BN-statistics outputs
    xim, _, _ = _im2col(x, 7, 7, 2, 3)
    y, st = conv2d_with_stats(xim, params['conv1_w'], params['conv1_groups'],
                              1, 1, 1, 0)
    sc, sh = _bn_scale_shift(st, params['bn1']['gamma'], params['bn1']['beta'])
    x = bn_relu_apply(y, sc, sh)
    endpoints['block2'] = x
    x = maxpool2d(x, 3, 2, 1)

    for bp in params['layer1']:
        x = basic_block_forward(x, bp)
    endpoints['block3'] = x
    for bp in params['layer2']:
        x = basic_block_forward(x, bp)
    endpoints['block4'] = x
    for bp in params['layer3']:
        x = basic_block_forward(x, bp)
    endpoints['block5'] = x
    for bp in params['layer4']:
        x = basic_block_forward(x, bp)
    endpoints['block6'] = x

    # head (num_classes is not None): fused global-avg-pool + Linear
    logits = avgpool_fc(x, params['fc_w'], params['fc_b'])

    if out_keys is None:
        endpoints = {}
    else:
        endpoints = {k: jnp.transpose(endpoints[k], (0, 3, 1, 2)
                                      ).astype(jnp.float32) for k in out_keys}
    return logits, endpoints


# ----------------------------------------------------------------------------
if __name__ == "__main__":
    key = jax.random.PRNGKey(0)
    pkey, xkey = jax.random.split(key)

    # small "ResNet(BasicBlock, [1,1,1,1], num_classes=10)" configuration
    params = make_resnet_params(pkey, layers=(1, 1, 1, 1),
                                num_classes=10, in_channels=3)

    # input: NCHW, batch=2, channels=3, spatial=32 (smallest clean size through 4 stages)
    x = jax.random.normal(xkey, (2, 3, 32, 32), jnp.float32)

    logits, endpoints = resnet_forward(params, x, out_keys=('block3', 'block5'))
    jax.block_until_ready((logits, endpoints))

    assert logits.shape == (2, 10)
    assert endpoints['block3'].shape == (2, 64, 8, 8)
    assert endpoints['block5'].shape == (2, 256, 2, 2)
    print("KERNEL_OK")
</pallas_src>

<mosaic_0001>
module attributes {stable_mosaic.version = 11 : i64} {
  func.func @_conv_kernel(%arg0: i32, %arg1: i32, %arg2: memref<1x1x16x16x147xbf16, #tpu.memory_space<vmem>>, %arg3: memref<1x147x64xbf16, #tpu.memory_space<vmem>>, %arg4: memref<1x256x64xbf16, #tpu.memory_space<vmem>>, %arg5: memref<1x1x64xf32, #tpu.memory_space<vmem>>, %arg6: memref<1x1x64xf32, #tpu.memory_space<vmem>>) attributes {dimension_semantics = [#tpu.dimension_semantics<parallel>, #tpu.dimension_semantics<arbitrary>], iteration_bounds = array<i64: 2, 1>, scalar_prefetch = 0 : i64, scratch_operands = 0 : i64, tpu.core_type = #tpu.core_type<tc>, window_params = [{transform_indices = @transform_0, window_bounds = array<i64: 1, 1, 16, 16, 147>}, {transform_indices = @transform_1, window_bounds = array<i64: 1, 147, 64>}, {transform_indices = @transform_2, window_bounds = array<i64: 1, 256, 64>}, {transform_indices = @transform_3, window_bounds = array<i64: 1, 1, 64>}, {transform_indices = @transform_4, window_bounds = array<i64: 1, 1, 64>}]} {
    %c0 = arith.constant 0 : index
    %c0_0 = arith.constant 0 : index
    %c0_1 = arith.constant 0 : index
    %c0_2 = arith.constant 0 : index
    %c0_3 = arith.constant 0 : index
    %0 = vector.load %arg2[%c0, %c0_0, %c0_1, %c0_2, %c0_3] : memref<1x1x16x16x147xbf16, #tpu.memory_space<vmem>>, vector<1x1x16x16x147xbf16>
    %1 = vector.shape_cast %0 : vector<1x1x16x16x147xbf16> to vector<16x16x147xbf16>
    %2 = vector.shape_cast %1 : vector<16x16x147xbf16> to vector<256x147xbf16>
    %c0_4 = arith.constant 0 : index
    %c0_5 = arith.constant 0 : index
    %c0_6 = arith.constant 0 : index
    %3 = vector.load %arg3[%c0_4, %c0_5, %c0_6] : memref<1x147x64xbf16, #tpu.memory_space<vmem>>, vector<1x147x64xbf16>
    %4 = vector.shape_cast %3 : vector<1x147x64xbf16> to vector<147x64xbf16>
    %cst = arith.constant dense<0.000000e+00> : vector<256x64xf32>
    %5 = tpu.matmul %2, %4, %cst {dimension_numbers = #tpu.dot_dimension_numbers<[1], [0], [0], [1], [0, 0, 1, 1], [], []>} : vector<256x147xbf16>, vector<147x64xbf16>, vector<256x64xf32> -> vector<256x64xf32>
    %6 = arith.truncf %5 : vector<256x64xf32> to vector<256x64xbf16>
    %c0_7 = arith.constant 0 : index
    %c0_8 = arith.constant 0 : index
    %c0_9 = arith.constant 0 : index
    %7 = vector.load %arg4[%c0_7, %c0_8, %c0_9] : memref<1x256x64xbf16, #tpu.memory_space<vmem>>, vector<1x256x64xbf16>
    %8 = vector.shape_cast %7 : vector<1x256x64xbf16> to vector<256x64xbf16>
    %9 = vector.shape_cast %6 : vector<256x64xbf16> to vector<1x256x64xbf16>
    tpu.vector_store %arg4[%c0_7, %c0_8, %c0_9], %9 {strides = array<i32>} : memref<1x256x64xbf16, #tpu.memory_space<vmem>>, vector<1x256x64xbf16>,
    %cst_10 = arith.constant dense<0.000000e+00> : vector<64xf32>
    %10 = vector.multi_reduction <add>, %5, %cst_10 [0] : vector<256x64xf32> to vector<64xf32>
    %11 = vector.shape_cast %10 : vector<64xf32> to vector<1x64xf32>
    %c0_11 = arith.constant 0 : index
    %c0_12 = arith.constant 0 : index
    %c0_13 = arith.constant 0 : index
    %12 = vector.load %arg5[%c0_11, %c0_12, %c0_13] : memref<1x1x64xf32, #tpu.memory_space<vmem>>, vector<1x1x64xf32>
    %13 = vector.shape_cast %12 : vector<1x1x64xf32> to vector<1x64xf32>
    %14 = vector.shape_cast %11 : vector<1x64xf32> to vector<1x1x64xf32>
    tpu.vector_store %arg5[%c0_11, %c0_12, %c0_13], %14 {strides = array<i32>} : memref<1x1x64xf32, #tpu.memory_space<vmem>>, vector<1x1x64xf32>,
    %15 = arith.mulf %5, %5 : vector<256x64xf32>
    %cst_14 = arith.constant dense<0.000000e+00> : vector<64xf32>
    %16 = vector.multi_reduction <add>, %15, %cst_14 [0] : vector<256x64xf32> to vector<64xf32>
    %17 = vector.shape_cast %16 : vector<64xf32> to vector<1x64xf32>
    %c0_15 = arith.constant 0 : index
    %c0_16 = arith.constant 0 : index
    %c0_17 = arith.constant 0 : index
    %18 = vector.load %arg6[%c0_15, %c0_16, %c0_17] : memref<1x1x64xf32, #tpu.memory_space<vmem>>, vector<1x1x64xf32>
    %19 = vector.shape_cast %18 : vector<1x1x64xf32> to vector<1x64xf32>
    %20 = vector.shape_cast %17 : vector<1x64xf32> to vector<1x1x64xf32>
    tpu.vector_store %arg6[%c0_15, %c0_16, %c0_17], %20 {strides = array<i32>} : memref<1x1x64xf32, #tpu.memory_space<vmem>>, vector<1x1x64xf32>,
    return
  }
  func.func @transform_0(%arg0: i32, %arg1: i32) -> (i32, i32, i32, i32, i32) {
    %c0_i32 = arith.constant 0 : i32
    %c0_i32_0 = arith.constant 0 : i32
    %c0_i32_1 = arith.constant 0 : i32
    %c0_i32_2 = arith.constant 0 : i32
    %c0_i32_3 = arith.constant 0 : i32
    return %arg0, %c0_i32, %c0_i32_0, %c0_i32_1, %c0_i32_2 : i32, i32, i32, i32, i32
  }
  func.func @transform_1(%arg0: i32, %arg1: i32) -> (i32, i32, i32) {
    %c0_i32 = arith.constant 0 : i32
    %c0_i32_0 = arith.constant 0 : i32
    %c0_i32_1 = arith.constant 0 : i32
    return %c0_i32, %c0_i32_0, %arg1 : i32, i32, i32
  }
  func.func @transform_2(%arg0: i32, %arg1: i32) -> (i32, i32, i32) {
    %c0_i32 = arith.constant 0 : i32
    %c0_i32_0 = arith.constant 0 : i32
    return %arg0, %c0_i32, %arg1 : i32, i32, i32
  }
  func.func @transform_3(%arg0: i32, %arg1: i32) -> (i32, i32, i32) {
    %c0_i32 = arith.constant 0 : i32
    %c0_i32_0 = arith.constant 0 : i32
    return %arg0, %c0_i32, %arg1 : i32, i32, i32
  }
  func.func @transform_4(%arg0: i32, %arg1: i32) -> (i32, i32, i32) {
    %c0_i32 = arith.constant 0 : i32
    %c0_i32_0 = arith.constant 0 : i32
    return %arg0, %c0_i32, %arg1 : i32, i32, i32
  }
}

</mosaic_0001>

<llo_original>
// kernel: tpu_custom_call.1
$region0: #{tpu_custom_call.1}
  #allocation0 [shape = 'u32[]', space=smem, size = 0x4, offset = 0x4, fixed_abs, tag = 'smem constant byte address 0x4 - core index']
  #allocation1 [shape = 'u32[144,128]{1,0:T(1,128)}', space=vmem, size = 0x12000, scoped, tag = 'internal scratch']
  %s0 = inlined_call_operand.hbm [shape: bf16[2,1,16,16,147], index: 0, kind: input, shape index: {}]
  %s1 = inlined_call_operand.vmem [shape: bf16[1,147,64], index: 1, kind: input, shape index: {}]
  %s2 = inlined_call_operand.vmem [shape: bf16[2,256,64], index: 2, kind: output, shape index: {0}]
  %s3 = inlined_call_operand.hbm [shape: f32[2,1,64], index: 3, kind: output, shape index: {1}]
  %s4 = inlined_call_operand.hbm [shape: f32[2,1,64], index: 4, kind: output, shape index: {2}]
  %5 = xla_tuple %s2, %s3, %s4
  %s6 = sld [smem:[#allocation0]]
  $region61: #{tpu_custom_call.1} parent=0
    _
  %s8 = ssub.s32 1, %s6
  %s9 = scalar_select 0, %s8, %s6
  $region1: #{tpu_custom_call.1} parent=0
    #allocation2 [shape = 'u8[262144]{0}', space=vmem, size = 0x40000, scoped, tag = 'input window, operand 0']
    #allocation3 [shape = 's32[2]{0}', space=sflag, size = 0x8, scoped, tag = 'scoped memory for tpu_custom_call.1']
    #allocation4 [shape = 's32[2]{0}', space=sflag, size = 0x8, scoped, tag = 'scoped memory for tpu_custom_call.1']
    #allocation5 [shape = 'u8[1024]{0}', space=vmem, size = 0x400, scoped, tag = 'output window, operand 1']
    #allocation6 [shape = 'u8[1024]{0}', space=vmem, size = 0x400, scoped, tag = 'output window, operand 2']
    #allocation7 [shape = 's32[2]{0}', space=sflag, size = 0x8, scoped, tag = 'scoped memory for tpu_custom_call.1']
    %10 = vsyncpa [#allocation3], 0
    %s11 = scalar_lea.sflag [#allocation3], 1
    %12 = vsyncpa %s11, 0
    %13 = vsyncpa [#allocation4], 0
    %s14 = scalar_lea.sflag [#allocation4], 1
    %15 = vsyncpa %s14, 0
    %16 = vsyncpa [#allocation7], 0
    %s17 = scalar_lea.sflag [#allocation7], 1
    %18 = vsyncpa %s17, 0
    loop: start=0, step=1, limit=4
    $region2: #{tpu_custom_call.1} parent=1 // loop_pre_header
      _
    $region3: #{tpu_custom_call.1} parent=1 // loop_header
      %s20 = sphi 0, %s24
      %p21 = scmp.ge.s32.totalorder %s20, 4
      %s27 = sphi 0, %s39
      %s28 = sphi 0, %s35
      %s29 = sphi 0, %s27
      %s30 = sphi 0, %s28
      %s31 = sphi 0, %s29
      %s32 = sphi 0, %s30
      %s42 = sphi 0, %s44
      %s45 = sphi 0, %s42
      %s46 = sphi 0, %s45
      %s62 = sphi 0, %s46
      %s68 = sphi 0, %s70
      %s71 = sphi 0, %s68
      %s72 = sphi 0, %s71
      %s88 = sphi 0, %s72
      %s96 = sphi 0, %s98
      %s99 = sphi 0, %s96
      %s100 = sphi 0, %s99
      %s116 = sphi 0, %s100
      %s124 = sphi 0, %s126
      %s127 = sphi 0, %s124
      %s128 = sphi 0, %s127
      %s144 = sphi 0, %s128
      %s152 = sphi 0, %s154
      %s155 = sphi 0, %s152
      %s156 = sphi 0, %s155
      %s172 = sphi 0, %s156
    $region4: #{tpu_custom_call.1} parent=1 // loop_header_branch
      %23 = sbr.rel (%p21) target = $region8
    $region5: #{tpu_custom_call.1} parent=1 // loop_body
      %s25 = ssub.s32 %s20, 1
      %s26 = ssub.s32 %s20, 2
      %s33 = sadd.s32 1, %s28
      %p34 = scmp.ge.s32.totalorder %s33, 1
      %s35 = scalar_select %p34, 0, %s33
      %s36 = sadd.s32 1, %s27
      %s37 = scalar_select %p34, %s36, %s27
      %p38 = scmp.ge.s32.totalorder %s37, 2
      %s39 = scalar_select %p38, 0, %s37
      %s40 = ssub.s32 %s27, %s39
      %p41 = scmp.eq.s32.totalorder %s40, 0
      %s43 = sadd.s32 %s42, 1
      %s44 = scalar_select %p41, %s42, %s43
      %p47 = pneg %p41
      %p48 = scmp.eq.s32.totalorder %s20, 1
      %p49 = por %p47, %p48
      %p50 = scmp.ne.s32.totalorder %s42, %s45
      %p51 = scmp.eq.s32.totalorder %s20, 0
      %p52 = por %p50, %p51
      %p53 = scmp.ne.s32.totalorder %s42, %s45
      %p54 = scmp.eq.s32.totalorder %s25, 1
      %p55 = por %p53, %p54
      %p56 = scmp.ne.s32.totalorder %s45, %s46
      %p57 = scmp.eq.s32.totalorder %s25, 0
      %p58 = por %p56, %p57
      %p59 = scmp.ne.s32.totalorder %s45, %s46
      %p60 = scmp.eq.s32.totalorder %s26, 1
      %p61 = por %p59, %p60
      %p63 = scmp.ne.s32.totalorder %s46, %s62
      %p64 = scmp.eq.s32.totalorder %s26, 0
      %p65 = por %p63, %p64
      %s66 = ssub.s32 %s28, %s35
      %p67 = scmp.eq.s32.totalorder %s66, 0
      %s69 = sadd.s32 %s68, 1
      %s70 = scalar_select %p67, %s68, %s69
      %p73 = pneg %p67
      %p74 = scmp.eq.s32.totalorder %s20, 1
      %p75 = por %p73, %p74
      %p76 = scmp.ne.s32.totalorder %s68, %s71
      %p77 = scmp.eq.s32.totalorder %s20, 0
      %p78 = por %p76, %p77
      %p79 = scmp.ne.s32.totalorder %s68, %s71
      %p80 = scmp.eq.s32.totalorder %s25, 1
      %p81 = por %p79, %p80
      %p82 = scmp.ne.s32.totalorder %s71, %s72
      %p83 = scmp.eq.s32.totalorder %s25, 0
      %p84 = por %p82, %p83
      %p85 = scmp.ne.s32.totalorder %s71, %s72
      %p86 = scmp.eq.s32.totalorder %s26, 1
      %p87 = por %p85, %p86
      %p89 = scmp.ne.s32.totalorder %s72, %s88
      %p90 = scmp.eq.s32.totalorder %s26, 0
      %p91 = por %p89, %p90
      %s92 = ssub.s32 %s27, %s39
      %s93 = ssub.s32 %s28, %s35
      %s94 = sor.u32 %s92, %s93
      %p95 = scmp.eq.s32.totalorder %s94, 0
      %s97 = sadd.s32 %s96, 1
      %s98 = scalar_select %p95, %s96, %s97
      %p101 = pneg %p95
      %p102 = scmp.eq.s32.totalorder %s20, 1
      %p103 = por %p101, %p102
      %p104 = scmp.ne.s32.totalorder %s96, %s99
      %p105 = scmp.eq.s32.totalorder %s20, 0
      %p106 = por %p104, %p105
      %p107 = scmp.ne.s32.totalorder %s96, %s99
      %p108 = scmp.eq.s32.totalorder %s25, 1
      %p109 = por %p107, %p108
      %p110 = scmp.ne.s32.totalorder %s99, %s100
      %p111 = scmp.eq.s32.totalorder %s25, 0
      %p112 = por %p110, %p111
      %p113 = scmp.ne.s32.totalorder %s99, %s100
      %p114 = scmp.eq.s32.totalorder %s26, 1
      %p115 = por %p113, %p114
      %p117 = scmp.ne.s32.totalorder %s100, %s116
      %p118 = scmp.eq.s32.totalorder %s26, 0
      %p119 = por %p117, %p118
      %s120 = ssub.s32 %s27, %s39
      %s121 = ssub.s32 %s28, %s35
      %s122 = sor.u32 %s120, %s121
      %p123 = scmp.eq.s32.totalorder %s122, 0
      %s125 = sadd.s32 %s124, 1
      %s126 = scalar_select %p123, %s124, %s125
      %p129 = pneg %p123
      %p130 = scmp.eq.s32.totalorder %s20, 1
      %p131 = por %p129, %p130
      %p132 = scmp.ne.s32.totalorder %s124, %s127
      %p133 = scmp.eq.s32.totalorder %s20, 0
      %p134 = por %p132, %p133
      %p135 = scmp.ne.s32.totalorder %s124, %s127
      %p136 = scmp.eq.s32.totalorder %s25, 1
      %p137 = por %p135, %p136
      %p138 = scmp.ne.s32.totalorder %s127, %s128
      %p139 = scmp.eq.s32.totalorder %s25, 0
      %p140 = por %p138, %p139
      %p141 = scmp.ne.s32.totalorder %s127, %s128
      %p142 = scmp.eq.s32.totalorder %s26, 1
      %p143 = por %p141, %p142
      %p145 = scmp.ne.s32.totalorder %s128, %s144
      %p146 = scmp.eq.s32.totalorder %s26, 0
      %p147 = por %p145, %p146
      %s148 = ssub.s32 %s27, %s39
      %s149 = ssub.s32 %s28, %s35
      %s150 = sor.u32 %s148, %s149
      %p151 = scmp.eq.s32.totalorder %s150, 0
      %s153 = sadd.s32 %s152, 1
      %s154 = scalar_select %p151, %s152, %s153
      %p157 = pneg %p151
      %p158 = scmp.eq.s32.totalorder %s20, 1
      %p159 = por %p157, %p158
      %p160 = scmp.ne.s32.totalorder %s152, %s155
      %p161 = scmp.eq.s32.totalorder %s20, 0
      %p162 = por %p160, %p161
      %p163 = scmp.ne.s32.totalorder %s152, %s155
      %p164 = scmp.eq.s32.totalorder %s25, 1
      %p165 = por %p163, %p164
      %p166 = scmp.ne.s32.totalorder %s155, %s156
      %p167 = scmp.eq.s32.totalorder %s25, 0
      %p168 = por %p166, %p167
      %p169 = scmp.ne.s32.totalorder %s155, %s156
      %p170 = scmp.eq.s32.totalorder %s26, 1
      %p171 = por %p169, %p170
      %p173 = scmp.ne.s32.totalorder %s156, %s172
      %p174 = scmp.eq.s32.totalorder %s26, 0
      %p175 = por %p173, %p174
      %p176 = scmp.le.s32.totalorder 1, %s20
      %p177 = scmp.lt.s32.totalorder %s20, 3
      %p178 = pnand %p176, %p177
      %p179 = pneg %p178
      // Predicated region
      $region9: #{tpu_custom_call.1} parent=5 // pred_check
        _
      $region10: #{tpu_custom_call.1} parent=5 // pred_check_branch
        %181 = sbr.rel (%p178) target = $region12
      $region11: #{tpu_custom_call.1} parent=5 // pred_region
        %s182 = ssub.s32 %s20, 1
        // Predicated region
        $region13: #{tpu_custom_call.1} parent=11 // pred_check
          %p183 = pneg %p84
        $region14: #{tpu_custom_call.1} parent=11 // pred_check_branch
          %185 = sbr.rel (%p183) target = $region16
        $region15: #{tpu_custom_call.1} parent=11 // pred_region
          %p186 = scmp.lt.s32.totalorder %s30, 0
          %s187 = scalar_select %p186, %s30, 0
          %s188 = smul.addr %s187, 4
          %s189 = scalar_lea.vmem %s1, %s188
        $region16: #{tpu_custom_call.1} parent=11 // pred_fallthru
          _
      $region12: #{tpu_custom_call.1} parent=5 // pred_fallthru
        _
      %p190 = scmp.lt.s32.totalorder %s20, 2
      // Predicated region
      $region17: #{tpu_custom_call.1} parent=5 // pred_check
        %p191 = pneg %p190
      $region18: #{tpu_custom_call.1} parent=5 // pred_check_branch
        %193 = sbr.rel (%p191) target = $region20
      $region19: #{tpu_custom_call.1} parent=5 // pred_region
        // Predicated region
        $region21: #{tpu_custom_call.1} parent=19 // pred_check
          %p194 = pneg %p52
        $region22: #{tpu_custom_call.1} parent=19 // pred_check_branch
          %196 = sbr.rel (%p194) target = $region24
        $region23: #{tpu_custom_call.1} parent=19 // pred_region
          %s197 = sand.u32 %s42, 1
          %s198 = scalar_lea.sflag [#allocation3], %s197
          %s199 = sand.u32 %s42, 1
          %s200 = smul.addr %s199, 256
          %s201 = scalar_lea.vmem [#allocation2], %s200
          %s203 = ssub.s32 4096, 4096
          %204 = vsyncadd %s198, %s203
          %s205 = smul.addr %s27, 64
          %s206 = smul.addr %s205, 64
          %s207 = scalar_lea.hbm %s0, %s206
          %s208 = sshll.u32 %s201, 4
          %s209 = int_to_ptr.vmem [resolvable:$true] %s208
          %214 = dma.hbm_to_vmem [thread:$0]  %s207, 4096, %s209, %s198, 128, 128, 8
        $region24: #{tpu_custom_call.1} parent=19 // pred_fallthru
          _
      $region20: #{tpu_custom_call.1} parent=5 // pred_fallthru
        _
      %p215 = scmp.le.s32.totalorder 1, %s20
      %p216 = scmp.lt.s32.totalorder %s20, 3
      %p217 = pnand %p215, %p216
      %p218 = pneg %p217
      // Predicated region
      $region25: #{tpu_custom_call.1} parent=5 // pred_check
        _
      $region26: #{tpu_custom_call.1} parent=5 // pred_check_branch
        %220 = sbr.rel (%p217) target = $region28
      $region27: #{tpu_custom_call.1} parent=5 // pred_region
        %s221 = ssub.s32 %s20, 1
        %s222 = sand.u32 %s45, 1
        %s223 = scalar_lea.sflag [#allocation3], %s222
        %s224 = sand.u32 %s45, 1
        %s225 = smul.addr %s224, 256
        %s226 = scalar_lea.vmem [#allocation2], %s225
        // Predicated region
        $region29: #{tpu_custom_call.1} parent=27 // pred_check
          %p227 = pneg %p58
        $region30: #{tpu_custom_call.1} parent=27 // pred_check_branch
          %229 = sbr.rel (%p227) target = $region32
        $region31: #{tpu_custom_call.1} parent=27 // pred_region
          %230 = dma.done %s223, 4096
        $region32: #{tpu_custom_call.1} parent=27 // pred_fallthru
          _
        %s231 = sand.u32 %s45, 1
        %s232 = scalar_lea.sflag [#allocation3], %s231
        %s233 = sand.u32 %s45, 1
        %s234 = smul.addr %s233, 256
        %s235 = scalar_lea.vmem [#allocation2], %s234
        %p236 = pneg %p58
        %p237 = pneg %p55
        %p238 = scmp.lt.s32.totalorder %s30, 0
        %s239 = scalar_select %p238, %s30, 0
        %s240 = smul.addr %s239, 4
        %s241 = scalar_lea.vmem %s1, %s240
        %p242 = pneg %p84
        %p243 = pneg %p81
        %p244 = pneg %p112
        %p245 = pneg %p109
        %p246 = scmp.lt.s32.totalorder %s29, 1
        %s247 = scalar_select %p246, %s29, 1
        %p248 = scmp.lt.s32.totalorder %s30, 0
        %s249 = scalar_select %p248, %s30, 0
        %s250 = smul.addr %s247, 32
        %s251 = sadd.s32 %s249, %s250
        %s252 = smul.addr %s251, 4
        %s253 = scalar_lea.vmem %s2, %s252
        %p254 = pneg %p140
        %p255 = pneg %p137
        %s256 = sand.u32 %s127, 1
        %s257 = scalar_lea.sflag [#allocation4], %s256
        %s258 = sand.u32 %s127, 1
        %s259 = scalar_lea.vmem [#allocation5], %s258
        %p260 = pneg %p168
        %p261 = pneg %p165
        %s262 = sand.u32 %s155, 1
        %s263 = scalar_lea.sflag [#allocation7], %s262
        %s264 = sand.u32 %s155, 1
        %s265 = scalar_lea.vmem [#allocation6], %s264
        %p266 = scmp.lt.s32.totalorder %s30, 0
        %s267 = scalar_select %p266, %s30, 0
        %s268 = smul.addr %s267, 4
        %s269 = scalar_lea.vmem %s1, %s268
        %p270 = scmp.lt.s32.totalorder %s29, 1
        %s271 = scalar_select %p270, %s29, 1
        %p272 = scmp.lt.s32.totalorder %s30, 0
        %s273 = scalar_select %p272, %s30, 0
        %s274 = smul.addr %s271, 32
        %s275 = sadd.s32 %s273, %s274
        %s276 = smul.addr %s275, 4
        %s277 = scalar_lea.vmem %s2, %s276
        %v279 = vld [vmem:[%s226] sm:$0xff]
        %v280 = vld [vmem:[%s226 + $0x8] sm:$0xff]
        %v281 = vld [vmem:[%s226 + $0x10] sm:$0xff]
        %v282 = vld [vmem:[%s226 + $0x18] sm:$0xff]
        %v283 = vld [vmem:[%s226 + $0x20] sm:$0xff]
        %v284 = vld [vmem:[%s226 + $0x28] sm:$0xff]
        %v285 = vld [vmem:[%s226 + $0x30] sm:$0xff]
        %v286 = vld [vmem:[%s226 + $0x38] sm:$0xff]
        %v287 = vld [vmem:[%s226 + $0x40] sm:$0xff]
        %v288 = vld [vmem:[%s226 + $0x48] sm:$0xff]
        %v289 = vld [vmem:[%s226 + $0x50] sm:$0xff]
        %v290 = vld [vmem:[%s226 + $0x58] sm:$0xff]
        %v291 = vld [vmem:[%s226 + $0x60] sm:$0xff]
        %v292 = vld [vmem:[%s226 + $0x68] sm:$0xff]
        %v293 = vld [vmem:[%s226 + $0x70] sm:$0xff]
        %v294 = vld [vmem:[%s226 + $0x78] sm:$0xff]
        %v295 = vld [vmem:[%s226 + $0x80] sm:$0xff]
        %v296 = vld [vmem:[%s226 + $0x88] sm:$0xff]
        %v297 = vld [vmem:[%s226 + $0x90] sm:$0xff]
        %v298 = vld [vmem:[%s226 + $0x98] sm:$0xff]
        %v299 = vld [vmem:[%s226 + $0xa0] sm:$0xff]
        %v300 = vld [vmem:[%s226 + $0xa8] sm:$0xff]
        %v301 = vld [vmem:[%s226 + $0xb0] sm:$0xff]
        %v302 = vld [vmem:[%s226 + $0xb8] sm:$0xff]
        %v303 = vld [vmem:[%s226 + $0xc0] sm:$0xff]
        %v304 = vld [vmem:[%s226 + $0xc8] sm:$0xff]
        %v305 = vld [vmem:[%s226 + $0xd0] sm:$0xff]
        %v306 = vld [vmem:[%s226 + $0xd8] sm:$0xff]
        %v307 = vld [vmem:[%s226 + $0xe0] sm:$0xff]
        %v308 = vld [vmem:[%s226 + $0xe8] sm:$0xff]
        %v309 = vld [vmem:[%s226 + $0xf0] sm:$0xff]
        %v310 = vld [vmem:[%s226 + $0xf8] sm:$0xff]
        %v311 = vld [vmem:[%s269] sm:$0xf]
        %v312 = vld [vmem:[%s269 + $0x4] sm:$0xf]
        %v313 = vld [vmem:[%s269 + $0x8] sm:$0xf]
        %v314 = vld [vmem:[%s269 + $0xc] sm:$0xf]
        %v315 = vld [vmem:[%s269 + $0x10] sm:$0xf]
        %v316 = vld [vmem:[%s269 + $0x14] sm:$0xf]
        %v317 = vld [vmem:[%s269 + $0x18] sm:$0xf]
        %v318 = vld [vmem:[%s269 + $0x1c] sm:$0xf]
        %v319 = vld [vmem:[%s269 + $0x20] sm:$0xf]
        %v320 = vld [vmem:[%s269 + $0x24] sm:$0xf]
        %v321 = vld [vmem:[%s269 + $0x28] sm:$0xf]
        %v322 = vld [vmem:[%s269 + $0x2c] sm:$0xf]
        %v323 = vld [vmem:[%s269 + $0x30] sm:$0xf]
        %v324 = vld [vmem:[%s269 + $0x34] sm:$0xf]
        %v325 = vld [vmem:[%s269 + $0x38] sm:$0xf]
        %v326 = vld [vmem:[%s269 + $0x3c] sm:$0xf]
        %v327 = vld [vmem:[%s269 + $0x40] sm:$0xf]
        %v328 = vld [vmem:[%s269 + $0x44] sm:$0xf]
        %v329 = vld [vmem:[%s269 + $0x48] sm:$0x3]
        %v362 = vunpack.c.l.b16 %v279
        %v363 = vunpack.c.h.b16 %v279
        %v364 = vunpack.c.l.b16 %v280
        %v365 = vunpack.c.h.b16 %v280
        %v366 = vunpack.c.l.b16 %v281
        %v367 = vunpack.c.h.b16 %v281
        %v368 = vunpack.c.l.b16 %v282
        %v369 = vunpack.c.h.b16 %v282
        %v370 = vunpack.c.l.b16 %v283
        %v371 = vunpack.c.h.b16 %v283
        %v372 = vunpack.c.l.b16 %v284
        %v373 = vunpack.c.h.b16 %v284
        %v374 = vunpack.c.l.b16 %v285
        %v375 = vunpack.c.h.b16 %v285
        %v376 = vunpack.c.l.b16 %v286
        %v377 = vunpack.c.h.b16 %v286
        %v378 = vunpack.c.l.b16 %v287
        %v379 = vunpack.c.h.b16 %v287
        %v380 = vunpack.c.l.b16 %v288
        %v381 = vunpack.c.h.b16 %v288
        %v382 = vunpack.c.l.b16 %v289
        %v383 = vunpack.c.h.b16 %v289
        %v384 = vunpack.c.l.b16 %v290
        %v385 = vunpack.c.h.b16 %v290
        %v386 = vunpack.c.l.b16 %v291
        %v387 = vunpack.c.h.b16 %v291
        %v388 = vunpack.c.l.b16 %v292
        %v389 = vunpack.c.h.b16 %v292
        %v390 = vunpack.c.l.b16 %v293
        %v391 = vunpack.c.h.b16 %v293
        %v392 = vunpack.c.l.b16 %v294
        %v393 = vunpack.c.h.b16 %v294
        %v394 = vunpack.c.l.b16 %v295
        %v395 = vunpack.c.h.b16 %v295
        %v396 = vunpack.c.l.b16 %v296
        %v397 = vunpack.c.h.b16 %v296
        %v398 = vunpack.c.l.b16 %v297
        %v399 = vunpack.c.h.b16 %v297
        %v400 = vunpack.c.l.b16 %v298
        %v401 = vunpack.c.h.b16 %v298
        %v402 = vunpack.c.l.b16 %v299
        %v403 = vunpack.c.h.b16 %v299
        %v404 = vunpack.c.l.b16 %v300
        %v405 = vunpack.c.h.b16 %v300
        %v406 = vunpack.c.l.b16 %v301
        %v407 = vunpack.c.h.b16 %v301
        %v408 = vunpack.c.l.b16 %v302
        %v409 = vunpack.c.h.b16 %v302
        %v410 = vunpack.c.l.b16 %v303
        %v411 = vunpack.c.h.b16 %v303
        %v412 = vunpack.c.l.b16 %v304
        %v413 = vunpack.c.h.b16 %v304
        %v414 = vunpack.c.l.b16 %v305
        %v415 = vunpack.c.h.b16 %v305
        %v416 = vunpack.c.l.b16 %v306
        %v417 = vunpack.c.h.b16 %v306
        %v418 = vunpack.c.l.b16 %v307
        %v419 = vunpack.c.h.b16 %v307
        %v420 = vunpack.c.l.b16 %v308
        %v421 = vunpack.c.h.b16 %v308
        %v422 = vunpack.c.l.b16 %v309
        %v423 = vunpack.c.h.b16 %v309
        %v424 = vunpack.c.l.b16 %v310
        %v425 = vunpack.c.h.b16 %v310
        %v426 = vpack.c.b16 %v364, %v362
        %v427 = vpack.c.b16 %v365, %v363
        %v428 = vpack.c.b16 %v368, %v366
        %v429 = vpack.c.b16 %v369, %v367
        %v430 = vpack.c.b16 %v372, %v370
        %v431 = vpack.c.b16 %v373, %v371
        %v432 = vpack.c.b16 %v376, %v374
        %v433 = vpack.c.b16 %v377, %v375
        %v434 = vpack.c.b16 %v380, %v378
        %v435 = vpack.c.b16 %v381, %v379
        %v436 = vpack.c.b16 %v384, %v382
        %v437 = vpack.c.b16 %v385, %v383
        %v438 = vpack.c.b16 %v388, %v386
        %v439 = vpack.c.b16 %v389, %v387
        %v440 = vpack.c.b16 %v392, %v390
        %v441 = vpack.c.b16 %v393, %v391
        %v442 = vpack.c.b16 %v396, %v394
        %v443 = vpack.c.b16 %v397, %v395
        %v444 = vpack.c.b16 %v400, %v398
        %v445 = vpack.c.b16 %v401, %v399
        %v446 = vpack.c.b16 %v404, %v402
        %v447 = vpack.c.b16 %v405, %v403
        %v448 = vpack.c.b16 %v408, %v406
        %v449 = vpack.c.b16 %v409, %v407
        %v450 = vpack.c.b16 %v412, %v410
        %v451 = vpack.c.b16 %v413, %v411
        %v452 = vpack.c.b16 %v416, %v414
        %v453 = vpack.c.b16 %v417, %v415
        %v454 = vpack.c.b16 %v420, %v418
        %v455 = vpack.c.b16 %v421, %v419
        %v456 = vpack.c.b16 %v424, %v422
        %v457 = vpack.c.b16 %v425, %v423
        %v493 = vunpack.c.l.b16 %v311
        %v494 = vunpack.c.l.b16 %v312
        %v495 = vunpack.c.l.b16 %v313
        %v496 = vunpack.c.l.b16 %v314
        %v497 = vunpack.c.l.b16 %v315
        %v498 = vunpack.c.l.b16 %v316
        %v499 = vunpack.c.l.b16 %v317
        %v500 = vunpack.c.l.b16 %v318
        %v501 = vunpack.c.l.b16 %v319
        %v502 = vunpack.c.l.b16 %v320
        %v503 = vunpack.c.l.b16 %v321
        %v504 = vunpack.c.l.b16 %v322
        %v505 = vunpack.c.l.b16 %v323
        %v506 = vunpack.c.l.b16 %v324
        %v507 = vunpack.c.l.b16 %v325
        %v508 = vunpack.c.l.b16 %v326
        %v509 = vunpack.c.l.b16 %v327
        %v510 = vunpack.c.l.b16 %v328
        %v511 = vunpack.c.l.b16 %v329
        %v512 = vpack.c.b16 %v494, %v493
        %v513 = vpack.c.b16 %v496, %v495
        %v514 = vpack.c.b16 %v498, %v497
        %v515 = vpack.c.b16 %v500, %v499
        %v516 = vpack.c.b16 %v502, %v501
        %v517 = vpack.c.b16 %v504, %v503
        %v518 = vpack.c.b16 %v506, %v505
        %v519 = vpack.c.b16 %v508, %v507
        %v520 = vpack.c.b16 %v510, %v509
        %v521 = vpack.c.b16 %v511, %v511
        %vm531 = vcmask 154624
        %v533 = vsel %vm531, %v427, 0
        %v536 = vsel %vm531, %v429, 0
        %v539 = vsel %vm531, %v431, 0
        %v542 = vsel %vm531, %v433, 0
        %v545 = vsel %vm531, %v435, 0
        %v548 = vsel %vm531, %v437, 0
        %v551 = vsel %vm531, %v439, 0
        %v554 = vsel %vm531, %v441, 0
        %v557 = vsel %vm531, %v443, 0
        %v560 = vsel %vm531, %v445, 0
        %v563 = vsel %vm531, %v447, 0
        %v566 = vsel %vm531, %v449, 0
        %v569 = vsel %vm531, %v451, 0
        %v572 = vsel %vm531, %v453, 0
        %v575 = vsel %vm531, %v455, 0
        %v578 = vsel %vm531, %v457, 0
        %vm580 = vcmask 1040384
        %vm581 = vcmask 1041408
        %v582 = vsel %vm580, 4294967295, 65535
        %v583 = vsel %vm581, %v582, 0
        %v585 = vand.u32 %v521, %v583
        %587 = vmatprep.subr.bf16.mxu0 0
        %588 = vmatpush1.bf16.msra.mxu0 %v512
        %589 = vmatprep.subr.bf16.mxu0 0
        %590 = vmatpush1.bf16.msra.mxu0 %v513
        %591 = vmatprep.subr.bf16.mxu0 0
        %592 = vmatpush1.bf16.msra.mxu0 %v514
        %593 = vmatprep.subr.bf16.mxu0 0
        %594 = vmatpush1.bf16.msra.mxu0 %v515
        %595 = vmatprep.subr.bf16.mxu0 0
        %596 = vmatpush1.bf16.msra.mxu0 %v516
        %597 = vmatprep.subr.bf16.mxu0 0
        %598 = vmatpush1.bf16.msra.mxu0 %v517
        %599 = vmatprep.subr.bf16.mxu0 0
        %600 = vmatpush1.bf16.msra.mxu0 %v518
        %601 = vmatprep.subr.bf16.mxu0 0
        %602 = vmatpush1.bf16.msra.mxu0 %v519
        %603 = vmatprep.subr.bf16.mxu0 0
        %604 = vmatpush1.bf16.msra.mxu0 %v520
        %605 = vmatprep.subr.bf16.mxu0 0
        %606 = vmatpush1.bf16.msra.mxu0 %v585
        %607 = vmatprep.subr.bf16.mxu0 0
        %608 = vmatpush1.bf16.msra.mxu0 0
        %609 = vmatprep.subr.bf16.mxu0 0
        %610 = vmatpush1.bf16.msra.mxu0 0
        %611 = vmatprep.subr.bf16.mxu0 0
        %612 = vmatpush1.bf16.msra.mxu0 0
        %613 = vmatprep.subr.bf16.mxu0 0
        %614 = vmatpush1.bf16.msra.mxu0 0
        %615 = vmatprep.subr.bf16.mxu0 0
        %616 = vmatpush1.bf16.msra.mxu0 0
        %617 = vmatprep.subr.bf16.mxu0 0
        %618 = vmatpush1.bf16.msra.mxu0 0
        %619 = vmatprep.mubr.bf16.mxu0 %v533
        %620 = vmatmul.mubr.bf16.gmra.mrb[0].mxu0 %v426
        %v621 = vpop.f32.mrb[0].mxu0
        %v622 = vadd.f32 0.0, %v621
        %v623 = vpop.f32.mrb[0].mxu0
        %v624 = vpop.f32.mrb[0].mxu0
        %v625 = vadd.f32 0.0, %v624
        %v626 = vpop.f32.mrb[0].mxu0
        %627 = vmatprep.mubr.bf16.mxu0 %v536
        %628 = vmatmul.mubr.bf16.gmra.mrb[0].mxu0 %v428
        %v629 = vpop.f32.mrb[0].mxu0
        %v630 = vadd.f32 0.0, %v629
        %v631 = vpop.f32.mrb[0].mxu0
        %v632 = vpop.f32.mrb[0].mxu0
        %v633 = vadd.f32 0.0, %v632
        %v634 = vpop.f32.mrb[0].mxu0
        %635 = vmatprep.mubr.bf16.mxu0 %v539
        %636 = vmatmul.mubr.bf16.gmra.mrb[0].mxu0 %v430
        %v637 = vpop.f32.mrb[0].mxu0
        %v638 = vadd.f32 0.0, %v637
        %v639 = vpop.f32.mrb[0].mxu0
        %v640 = vpop.f32.mrb[0].mxu0
        %v641 = vadd.f32 0.0, %v640
        %v642 = vpop.f32.mrb[0].mxu0
        %643 = vmatprep.mubr.bf16.mxu0 %v542
        %644 = vmatmul.mubr.bf16.gmra.mrb[0].mxu0 %v432
        %v645 = vpop.f32.mrb[0].mxu0
        %v646 = vadd.f32 0.0, %v645
        %v647 = vpop.f32.mrb[0].mxu0
        %v648 = vpop.f32.mrb[0].mxu0
        %v649 = vadd.f32 0.0, %v648
        %v650 = vpop.f32.mrb[0].mxu0
        %651 = vmatprep.mubr.bf16.mxu0 %v545
        %652 = vmatmul.mubr.bf16.gmra.mrb[0].mxu0 %v434
        %v653 = vpop.f32.mrb[0].mxu0
        %v654 = vadd.f32 0.0, %v653
        %v655 = vpop.f32.mrb[0].mxu0
        %v656 = vpop.f32.mrb[0].mxu0
        %v657 = vadd.f32 0.0, %v656
        %v658 = vpop.f32.mrb[0].mxu0
        %659 = vmatprep.mubr.bf16.mxu0 %v548
        %660 = vmatmul.mubr.bf16.gmra.mrb[0].mxu0 %v436
        %v661 = vpop.f32.mrb[0].mxu0
        %v662 = vadd.f32 0.0, %v661
        %v663 = vpop.f32.mrb[0].mxu0
        %v664 = vpop.f32.mrb[0].mxu0
        %v665 = vadd.f32 0.0, %v664
        %v666 = vpop.f32.mrb[0].mxu0
        %667 = vmatprep.mubr.bf16.mxu0 %v551
        %668 = vmatmul.mubr.bf16.gmra.mrb[0].mxu0 %v438
        %v669 = vpop.f32.mrb[0].mxu0
        %v670 = vadd.f32 0.0, %v669
        %v671 = vpop.f32.mrb[0].mxu0
        %v672 = vpop.f32.mrb[0].mxu0
        %v673 = vadd.f32 0.0, %v672
        %v674 = vpop.f32.mrb[0].mxu0
        %675 = vmatprep.mubr.bf16.mxu0 %v554
        %676 = vmatmul.mubr.bf16.gmra.mrb[0].mxu0 %v440
        %v677 = vpop.f32.mrb[0].mxu0
        %v678 = vadd.f32 0.0, %v677
        %v679 = vpop.f32.mrb[0].mxu0
        %v680 = vpop.f32.mrb[0].mxu0
        %v681 = vadd.f32 0.0, %v680
        %v682 = vpop.f32.mrb[0].mxu0
        %683 = vmatprep.mubr.bf16.mxu0 %v557
        %684 = vmatmul.mubr.bf16.gmra.mrb[0].mxu0 %v442
        %v685 = vpop.f32.mrb[0].mxu0
        %v686 = vadd.f32 0.0, %v685
        %v687 = vpop.f32.mrb[0].mxu0
        %v688 = vpop.f32.mrb[0].mxu0
        %v689 = vadd.f32 0.0, %v688
        %v690 = vpop.f32.mrb[0].mxu0
        %691 = vmatprep.mubr.bf16.mxu0 %v560
        %692 = vmatmul.mubr.bf16.gmra.mrb[0].mxu0 %v444
        %v693 = vpop.f32.mrb[0].mxu0
        %v694 = vadd.f32 0.0, %v693
        %v695 = vpop.f32.mrb[0].mxu0
        %v696 = vpop.f32.mrb[0].mxu0
        %v697 = vadd.f32 0.0, %v696
        %v698 = vpop.f32.mrb[0].mxu0
        %699 = vmatprep.mubr.bf16.mxu0 %v563
        %700 = vmatmul.mubr.bf16.gmra.mrb[0].mxu0 %v446
        %v701 = vpop.f32.mrb[0].mxu0
        %v702 = vadd.f32 0.0, %v701
        %v703 = vpop.f32.mrb[0].mxu0
        %v704 = vpop.f32.mrb[0].mxu0
        %v705 = vadd.f32 0.0, %v704
        %v706 = vpop.f32.mrb[0].mxu0
        %707 = vmatprep.mubr.bf16.mxu0 %v566
        %708 = vmatmul.mubr.bf16.gmra.mrb[0].mxu0 %v448
        %v709 = vpop.f32.mrb[0].mxu0
        %v710 = vadd.f32 0.0, %v709
        %v711 = vpop.f32.mrb[0].mxu0
        %v712 = vpop.f32.mrb[0].mxu0
        %v713 = vadd.f32 0.0, %v712
        %v714 = vpop.f32.mrb[0].mxu0
        %715 = vmatprep.mubr.bf16.mxu0 %v569
        %716 = vmatmul.mubr.bf16.gmra.mrb[0].mxu0 %v450
        %v717 = vpop.f32.mrb[0].mxu0
        %v718 = vadd.f32 0.0, %v717
        %v719 = vpop.f32.mrb[0].mxu0
        %v720 = vpop.f32.mrb[0].mxu0
        %v721 = vadd.f32 0.0, %v720
        %v722 = vpop.f32.mrb[0].mxu0
        %723 = vmatprep.mubr.bf16.mxu0 %v572
        %724 = vmatmul.mubr.bf16.gmra.mrb[0].mxu0 %v452
        %v725 = vpop.f32.mrb[0].mxu0
        %v726 = vadd.f32 0.0, %v725
        %v727 = vpop.f32.mrb[0].mxu0
        %v728 = vpop.f32.mrb[0].mxu0
        %v729 = vadd.f32 0.0, %v728
        %v730 = vpop.f32.mrb[0].mxu0
        %731 = vmatprep.mubr.bf16.mxu0 %v575
        %732 = vmatmul.mubr.bf16.gmra.mrb[0].mxu0 %v454
        %v733 = vpop.f32.mrb[0].mxu0
        %v734 = vadd.f32 0.0, %v733
        %v735 = vpop.f32.mrb[0].mxu0
        %v736 = vpop.f32.mrb[0].mxu0
        %v737 = vadd.f32 0.0, %v736
        %v738 = vpop.f32.mrb[0].mxu0
        %739 = vmatprep.mubr.bf16.mxu0 %v578
        %740 = vmatmul.mubr.bf16.gmra.mrb[0].mxu0 %v456
        %v741 = vpop.f32.mrb[0].mxu0
        %v742 = vadd.f32 0.0, %v741
        %v743 = vpop.f32.mrb[0].mxu0
        %v744 = vpop.f32.mrb[0].mxu0
        %v745 = vadd.f32 0.0, %v744
        %v746 = vpop.f32.mrb[0].mxu0
        %747 = vdwg.mxu0
        %v748 = vpack.c.bf16 %v625, %v622
        %v749 = vpack.c.bf16 %v633, %v630
        %v750 = vpack.c.bf16 %v641, %v638
        %v751 = vpack.c.bf16 %v649, %v646
        %v752 = vpack.c.bf16 %v657, %v654
        %v753 = vpack.c.bf16 %v665, %v662
        %v754 = vpack.c.bf16 %v673, %v670
        %v755 = vpack.c.bf16 %v681, %v678
        %v756 = vpack.c.bf16 %v689, %v686
        %v757 = vpack.c.bf16 %v697, %v694
        %v758 = vpack.c.bf16 %v705, %v702
        %v759 = vpack.c.bf16 %v713, %v710
        %v760 = vpack.c.bf16 %v721, %v718
        %v761 = vpack.c.bf16 %v729, %v726
        %v762 = vpack.c.bf16 %v737, %v734
        %v763 = vpack.c.bf16 %v745, %v742
        %v780 = vunpack.c.l.b16 %v748
        %v781 = vunpack.c.h.b16 %v748
        %v782 = vunpack.c.l.b16 %v749
        %v783 = vunpack.c.h.b16 %v749
        %v784 = vunpack.c.l.b16 %v750
        %v785 = vunpack.c.h.b16 %v750
        %v786 = vunpack.c.l.b16 %v751
        %v787 = vunpack.c.h.b16 %v751
        %v788 = vunpack.c.l.b16 %v752
        %v789 = vunpack.c.h.b16 %v752
        %v790 = vunpack.c.l.b16 %v753
        %v791 = vunpack.c.h.b16 %v753
        %v792 = vunpack.c.l.b16 %v754
        %v793 = vunpack.c.h.b16 %v754
        %v794 = vunpack.c.l.b16 %v755
        %v795 = vunpack.c.h.b16 %v755
        %v796 = vunpack.c.l.b16 %v756
        %v797 = vunpack.c.h.b16 %v756
        %v798 = vunpack.c.l.b16 %v757
        %v799 = vunpack.c.h.b16 %v757
        %v800 = vunpack.c.l.b16 %v758
        %v801 = vunpack.c.h.b16 %v758
        %v802 = vunpack.c.l.b16 %v759
        %v803 = vunpack.c.h.b16 %v759
        %v804 = vunpack.c.l.b16 %v760
        %v805 = vunpack.c.h.b16 %v760
        %v806 = vunpack.c.l.b16 %v761
        %v807 = vunpack.c.h.b16 %v761
        %v808 = vunpack.c.l.b16 %v762
        %v809 = vunpack.c.h.b16 %v762
        %v810 = vunpack.c.l.b16 %v763
        %v811 = vunpack.c.h.b16 %v763
        %v812 = vpack.c.b16 %v780, %v780
        %v813 = vpack.c.b16 %v781, %v781
        %v814 = vpack.c.b16 %v782, %v782
        %v815 = vpack.c.b16 %v783, %v783
        %v816 = vpack.c.b16 %v784, %v784
        %v817 = vpack.c.b16 %v785, %v785
        %v818 = vpack.c.b16 %v786, %v786
        %v819 = vpack.c.b16 %v787, %v787
        %v820 = vpack.c.b16 %v788, %v788
        %v821 = vpack.c.b16 %v789, %v789
        %v822 = vpack.c.b16 %v790, %v790
        %v823 = vpack.c.b16 %v791, %v791
        %v824 = vpack.c.b16 %v792, %v792
        %v825 = vpack.c.b16 %v793, %v793
        %v826 = vpack.c.b16 %v794, %v794
        %v827 = vpack.c.b16 %v795, %v795
        %v828 = vpack.c.b16 %v796, %v796
        %v829 = vpack.c.b16 %v797, %v797
        %v830 = vpack.c.b16 %v798, %v798
        %v831 = vpack.c.b16 %v799, %v799
        %v832 = vpack.c.b16 %v800, %v800
        %v833 = vpack.c.b16 %v801, %v801
        %v834 = vpack.c.b16 %v802, %v802
        %v835 = vpack.c.b16 %v803, %v803
        %v836 = vpack.c.b16 %v804, %v804
        %v837 = vpack.c.b16 %v805, %v805
        %v838 = vpack.c.b16 %v806, %v806
        %v839 = vpack.c.b16 %v807, %v807
        %v840 = vpack.c.b16 %v808, %v808
        %v841 = vpack.c.b16 %v809, %v809
        %v842 = vpack.c.b16 %v810, %v810
        %v843 = vpack.c.b16 %v811, %v811
        %vm876 = vcmask 519168
        %877 = vst.msk [vmem:[%s277] sm:$0xf] %vm876, %v812
        %878 = vst.msk [vmem:[%s277 + $0x4] sm:$0xf] %vm876, %v813
        %879 = vst.msk [vmem:[%s277 + $0x8] sm:$0xf] %vm876, %v814
        %880 = vst.msk [vmem:[%s277 + $0xc] sm:$0xf] %vm876, %v815
        %881 = vst.msk [vmem:[%s277 + $0x10] sm:$0xf] %vm876, %v816
        %882 = vst.msk [vmem:[%s277 + $0x14] sm:$0xf] %vm876, %v817
        %883 = vst.msk [vmem:[%s277 + $0x18] sm:$0xf] %vm876, %v818
        %884 = vst.msk [vmem:[%s277 + $0x1c] sm:$0xf] %vm876, %v819
        %885 = vst.msk [vmem:[%s277 + $0x20] sm:$0xf] %vm876, %v820
        %886 = vst.msk [vmem:[%s277 + $0x24] sm:$0xf] %vm876, %v821
        %887 = vst.msk [vmem:[%s277 + $0x28] sm:$0xf] %vm876, %v822
        %888 = vst.msk [vmem:[%s277 + $0x2c] sm:$0xf] %vm876, %v823
        %889 = vst.msk [vmem:[%s277 + $0x30] sm:$0xf] %vm876, %v824
        %890 = vst.msk [vmem:[%s277 + $0x34] sm:$0xf] %vm876, %v825
        %891 = vst.msk [vmem:[%s277 + $0x38] sm:$0xf] %vm876, %v826
        %892 = vst.msk [vmem:[%s277 + $0x3c] sm:$0xf] %vm876, %v827
        %893 = vst.msk [vmem:[%s277 + $0x40] sm:$0xf] %vm876, %v828
        %894 = vst.msk [vmem:[%s277 + $0x44] sm:$0xf] %vm876, %v829
        %895 = vst.msk [vmem:[%s277 + $0x48] sm:$0xf] %vm876, %v830
        %896 = vst.msk [vmem:[%s277 + $0x4c] sm:$0xf] %vm876, %v831
        %897 = vst.msk [vmem:[%s277 + $0x50] sm:$0xf] %vm876, %v832
        %898 = vst.msk [vmem:[%s277 + $0x54] sm:$0xf] %vm876, %v833
        %899 = vst.msk [vmem:[%s277 + $0x58] sm:$0xf] %vm876, %v834
        %900 = vst.msk [vmem:[%s277 + $0x5c] sm:$0xf] %vm876, %v835
        %901 = vst.msk [vmem:[%s277 + $0x60] sm:$0xf] %vm876, %v836
        %902 = vst.msk [vmem:[%s277 + $0x64] sm:$0xf] %vm876, %v837
        %903 = vst.msk [vmem:[%s277 + $0x68] sm:$0xf] %vm876, %v838
        %904 = vst.msk [vmem:[%s277 + $0x6c] sm:$0xf] %vm876, %v839
        %905 = vst.msk [vmem:[%s277 + $0x70] sm:$0xf] %vm876, %v840
        %906 = vst.msk [vmem:[%s277 + $0x74] sm:$0xf] %vm876, %v841
        %907 = vst.msk [vmem:[%s277 + $0x78] sm:$0xf] %vm876, %v842
        %908 = vst.msk [vmem:[%s277 + $0x7c] sm:$0xf] %vm876, %v843
        %vm909 = vcmask 523264
        %v910 = vsel %vm909, %v622, 0.0
        %v911 = vsel %vm909, %v625, 0.0
        %v912 = vadd.f32 %v910, %v911
        %v913 = vsel %vm909, %v630, 0.0
        %v914 = vadd.f32 %v912, %v913
        %v915 = vsel %vm909, %v633, 0.0
        %v916 = vadd.f32 %v914, %v915
        %v917 = vsel %vm909, %v638, 0.0
        %v918 = vadd.f32 %v916, %v917
        %v919 = vsel %vm909, %v641, 0.0
        %v920 = vadd.f32 %v918, %v919
        %v921 = vsel %vm909, %v646, 0.0
        %v922 = vadd.f32 %v920, %v921
        %v923 = vsel %vm909, %v649, 0.0
        %v924 = vadd.f32 %v922, %v923
        %v925 = vsel %vm909, %v654, 0.0
        %v926 = vadd.f32 %v924, %v925
        %v927 = vsel %vm909, %v657, 0.0
        %v928 = vadd.f32 %v926, %v927
        %v929 = vsel %vm909, %v662, 0.0
        %v930 = vadd.f32 %v928, %v929
        %v931 = vsel %vm909, %v665, 0.0
        %v932 = vadd.f32 %v930, %v931
        %v933 = vsel %vm909, %v670, 0.0
        %v934 = vadd.f32 %v932, %v933
        %v935 = vsel %vm909, %v673, 0.0
        %v936 = vadd.f32 %v934, %v935
        %v937 = vsel %vm909, %v678, 0.0
        %v938 = vadd.f32 %v936, %v937
        %v939 = vsel %vm909, %v681, 0.0
        %v940 = vadd.f32 %v938, %v939
        %v941 = vsel %vm909, %v686, 0.0
        %v942 = vadd.f32 %v940, %v941
        %v943 = vsel %vm909, %v689, 0.0
        %v944 = vadd.f32 %v942, %v943
        %v945 = vsel %vm909, %v694, 0.0
        %v946 = vadd.f32 %v944, %v945
        %v947 = vsel %vm909, %v697, 0.0
        %v948 = vadd.f32 %v946, %v947
        %v949 = vsel %vm909, %v702, 0.0
        %v950 = vadd.f32 %v948, %v949
        %v951 = vsel %vm909, %v705, 0.0
        %v952 = vadd.f32 %v950, %v951
        %v953 = vsel %vm909, %v710, 0.0
        %v954 = vadd.f32 %v952, %v953
        %v955 = vsel %vm909, %v713, 0.0
        %v956 = vadd.f32 %v954, %v955
        %v957 = vsel %vm909, %v718, 0.0
        %v958 = vadd.f32 %v956, %v957
        %v959 = vsel %vm909, %v721, 0.0
        %v960 = vadd.f32 %v958, %v959
        %v961 = vsel %vm909, %v726, 0.0
        %v962 = vadd.f32 %v960, %v961
        %v963 = vsel %vm909, %v729, 0.0
        %v964 = vadd.f32 %v962, %v963
        %v965 = vsel %vm909, %v734, 0.0
        %v966 = vadd.f32 %v964, %v965
        %v967 = vsel %vm909, %v737, 0.0
        %v968 = vadd.f32 %v966, %v967
        %v969 = vsel %vm909, %v742, 0.0
        %v970 = vadd.f32 %v968, %v969
        %v971 = vsel %vm909, %v745, 0.0
        %v972 = vadd.f32 %v970, %v971
        %v973 = vrot.slane %v972, 4
        %v974 = vadd.f32 %v972, %v973
        %v975 = vrot.slane %v974, 2
        %v976 = vadd.f32 %v974, %v975
        %v977 = vrot.slane %v976, 1
        %v978 = vadd.f32 %v976, %v977
        %vm979 = vcmask 516096
        %980 = vst.msk [vmem:[%s259] sm:$0x1] %vm979, %v978
        %v981 = vmul.f32 %v622, %v622
        %v982 = vmul.f32 %v625, %v625
        %v983 = vmul.f32 %v630, %v630
        %v984 = vmul.f32 %v633, %v633
        %v985 = vmul.f32 %v638, %v638
        %v986 = vmul.f32 %v641, %v641
        %v987 = vmul.f32 %v646, %v646
        %v988 = vmul.f32 %v649, %v649
        %v989 = vmul.f32 %v654, %v654
        %v990 = vmul.f32 %v657, %v657
        %v991 = vmul.f32 %v662, %v662
        %v992 = vmul.f32 %v665, %v665
        %v993 = vmul.f32 %v670, %v670
        %v994 = vmul.f32 %v673, %v673
        %v995 = vmul.f32 %v678, %v678
        %v996 = vmul.f32 %v681, %v681
        %v997 = vmul.f32 %v686, %v686
        %v998 = vmul.f32 %v689, %v689
        %v999 = vmul.f32 %v694, %v694
        %v1000 = vmul.f32 %v697, %v697
        %v1001 = vmul.f32 %v702, %v702
        %v1002 = vmul.f32 %v705, %v705
        %v1003 = vmul.f32 %v710, %v710
        %v1004 = vmul.f32 %v713, %v713
        %v1005 = vmul.f32 %v718, %v718
        %v1006 = vmul.f32 %v721, %v721
        %v1007 = vmul.f32 %v726, %v726
        %v1008 = vmul.f32 %v729, %v729
        %v1009 = vmul.f32 %v734, %v734
        %v1010 = vmul.f32 %v737, %v737
        %v1011 = vmul.f32 %v742, %v742
        %v1012 = vmul.f32 %v745, %v745
        %v1013 = vsel %vm909, %v981, 0.0
        %v1014 = vsel %vm909, %v982, 0.0
        %v1015 = vadd.f32 %v1013, %v1014
        %v1016 = vsel %vm909, %v983, 0.0
        %v1017 = vadd.f32 %v1015, %v1016
        %v1018 = vsel %vm909, %v984, 0.0
        %v1019 = vadd.f32 %v1017, %v1018
        %v1020 = vsel %vm909, %v985, 0.0
        %v1021 = vadd.f32 %v1019, %v1020
        %v1022 = vsel %vm909, %v986, 0.0
        %v1023 = vadd.f32 %v1021, %v1022
        %v1024 = vsel %vm909, %v987, 0.0
        %v1025 = vadd.f32 %v1023, %v1024
        %v1026 = vsel %vm909, %v988, 0.0
        %v1027 = vadd.f32 %v1025, %v1026
        %v1028 = vsel %vm909, %v989, 0.0
        %v1029 = vadd.f32 %v1027, %v1028
        %v1030 = vsel %vm909, %v990, 0.0
        %v1031 = vadd.f32 %v1029, %v1030
        %v1032 = vsel %vm909, %v991, 0.0
        %v1033 = vadd.f32 %v1031, %v1032
        %v1034 = vsel %vm909, %v992, 0.0
        %v1035 = vadd.f32 %v1033, %v1034
        %v1036 = vsel %vm909, %v993, 0.0
        %v1037 = vadd.f32 %v1035, %v1036
        %v1038 = vsel %vm909, %v994, 0.0
        %v1039 = vadd.f32 %v1037, %v1038
        %v1040 = vsel %vm909, %v995, 0.0
        %v1041 = vadd.f32 %v1039, %v1040
        %v1042 = vsel %vm909, %v996, 0.0
        %v1043 = vadd.f32 %v1041, %v1042
        %v1044 = vsel %vm909, %v997, 0.0
        %v1045 = vadd.f32 %v1043, %v1044
        %v1046 = vsel %vm909, %v998, 0.0
        %v1047 = vadd.f32 %v1045, %v1046
        %v1048 = vsel %vm909, %v999, 0.0
        %v1049 = vadd.f32 %v1047, %v1048
        %v1050 = vsel %vm909, %v1000, 0.0
        %v1051 = vadd.f32 %v1049, %v1050
        %v1052 = vsel %vm909, %v1001, 0.0
        %v1053 = vadd.f32 %v1051, %v1052
        %v1054 = vsel %vm909, %v1002, 0.0
        %v1055 = vadd.f32 %v1053, %v1054
        %v1056 = vsel %vm909, %v1003, 0.0
        %v1057 = vadd.f32 %v1055, %v1056
        %v1058 = vsel %vm909, %v1004, 0.0
        %v1059 = vadd.f32 %v1057, %v1058
        %v1060 = vsel %vm909, %v1005, 0.0
        %v1061 = vadd.f32 %v1059, %v1060
        %v1062 = vsel %vm909, %v1006, 0.0
        %v1063 = vadd.f32 %v1061, %v1062
        %v1064 = vsel %vm909, %v1007, 0.0
        %v1065 = vadd.f32 %v1063, %v1064
        %v1066 = vsel %vm909, %v1008, 0.0
        %v1067 = vadd.f32 %v1065, %v1066
        %v1068 = vsel %vm909, %v1009, 0.0
        %v1069 = vadd.f32 %v1067, %v1068
        %v1070 = vsel %vm909, %v1010, 0.0
        %v1071 = vadd.f32 %v1069, %v1070
        %v1072 = vsel %vm909, %v1011, 0.0
        %v1073 = vadd.f32 %v1071, %v1072
        %v1074 = vsel %vm909, %v1012, 0.0
        %v1075 = vadd.f32 %v1073, %v1074
        %v1076 = vrot.slane %v1075, 4
        %v1077 = vadd.f32 %v1075, %v1076
        %v1078 = vrot.slane %v1077, 2
        %v1079 = vadd.f32 %v1077, %v1078
        %v1080 = vrot.slane %v1079, 1
        %v1081 = vadd.f32 %v1079, %v1080
        %1082 = vst.msk [vmem:[%s265] sm:$0x1] %vm979, %v1081
        %p1083 = scmp.lt.s32.totalorder %s29, 1
        %s1084 = scalar_select %p1083, %s29, 1
        %p1085 = scmp.lt.s32.totalorder %s30, 0
        %s1086 = scalar_select %p1085, %s30, 0
        %s1087 = smul.addr %s1084, 32
        %s1088 = sadd.s32 %s1086, %s1087
        %s1089 = smul.addr %s1088, 4
        %s1090 = scalar_lea.vmem %s2, %s1089
        %s1091 = sand.u32 %s127, 1
        %s1092 = scalar_lea.sflag [#allocation4], %s1091
        %s1093 = sand.u32 %s127, 1
        %s1094 = scalar_lea.vmem [#allocation5], %s1093
        %s1095 = sand.u32 %s155, 1
        %s1096 = scalar_lea.sflag [#allocation7], %s1095
        %s1097 = sand.u32 %s155, 1
        %s1098 = scalar_lea.vmem [#allocation6], %s1097
        // Predicated region
        $region33: #{tpu_custom_call.1} parent=27 // pred_check
          %p1099 = pneg %p109
        $region34: #{tpu_custom_call.1} parent=27 // pred_check_branch
          %1101 = sbr.rel (%p1099) target = $region36
        $region35: #{tpu_custom_call.1} parent=27 // pred_region
          _
        $region36: #{tpu_custom_call.1} parent=27 // pred_fallthru
          _
        // Predicated region
        $region37: #{tpu_custom_call.1} parent=27 // pred_check
          %p1102 = pneg %p137
        $region38: #{tpu_custom_call.1} parent=27 // pred_check_branch
          %1104 = sbr.rel (%p1102) target = $region40
        $region39: #{tpu_custom_call.1} parent=27 // pred_region
          %s1106 = ssub.s32 16, 16
          %1107 = vsyncadd %s1092, %s1106
          %s1108 = sadd.s32 %s30, %s29
          %s1109 = smul.addr %s1108, 16
          %s1110 = scalar_lea.hbm %s3, %s1109
          %s1112 = sshll.u32 %s1094, 4
          %s1113 = int_to_ptr.vmem [resolvable:$true] %s1112
          %1115 = dma.vmem_to_hbm [thread:$0]  %s1113, 16, %s1110, %s1092
        $region40: #{tpu_custom_call.1} parent=27 // pred_fallthru
          _
        // Predicated region
        $region41: #{tpu_custom_call.1} parent=27 // pred_check
          %p1116 = pneg %p165
        $region42: #{tpu_custom_call.1} parent=27 // pred_check_branch
          %1118 = sbr.rel (%p1116) target = $region44
        $region43: #{tpu_custom_call.1} parent=27 // pred_region
          %s1120 = ssub.s32 16, 16
          %1121 = vsyncadd %s1096, %s1120
          %s1122 = sadd.s32 %s30, %s29
          %s1123 = smul.addr %s1122, 16
          %s1124 = scalar_lea.hbm %s4, %s1123
          %s1126 = sshll.u32 %s1098, 4
          %s1127 = int_to_ptr.vmem [resolvable:$true] %s1126
          %1129 = dma.vmem_to_hbm [thread:$0]  %s1127, 16, %s1124, %s1096
        $region44: #{tpu_custom_call.1} parent=27 // pred_fallthru
          _
      $region28: #{tpu_custom_call.1} parent=5 // pred_fallthru
        _
      %p1130 = scmp.le.s32.totalorder 2, %s20
      // Predicated region
      $region45: #{tpu_custom_call.1} parent=5 // pred_check
        %p1131 = pneg %p1130
      $region46: #{tpu_custom_call.1} parent=5 // pred_check_branch
        %1133 = sbr.rel (%p1131) target = $region48
      $region47: #{tpu_custom_call.1} parent=5 // pred_region
        %s1134 = ssub.s32 %s20, 2
        // Predicated region
        $region49: #{tpu_custom_call.1} parent=47 // pred_check
          %p1135 = pneg %p115
        $region50: #{tpu_custom_call.1} parent=47 // pred_check_branch
          %1137 = sbr.rel (%p1135) target = $region52
        $region51: #{tpu_custom_call.1} parent=47 // pred_region
          %p1138 = scmp.lt.s32.totalorder %s31, 1
          %s1139 = scalar_select %p1138, %s31, 1
          %p1140 = scmp.lt.s32.totalorder %s32, 0
          %s1141 = scalar_select %p1140, %s32, 0
          %s1142 = smul.addr %s1139, 32
          %s1143 = sadd.s32 %s1141, %s1142
          %s1144 = smul.addr %s1143, 4
          %s1145 = scalar_lea.vmem %s2, %s1144
        $region52: #{tpu_custom_call.1} parent=47 // pred_fallthru
          _
        // Predicated region
        $region53: #{tpu_custom_call.1} parent=47 // pred_check
          %p1146 = pneg %p143
        $region54: #{tpu_custom_call.1} parent=47 // pred_check_branch
          %1148 = sbr.rel (%p1146) target = $region56
        $region55: #{tpu_custom_call.1} parent=47 // pred_region
          %s1149 = sand.u32 %s128, 1
          %s1150 = scalar_lea.sflag [#allocation4], %s1149
          %s1151 = sand.u32 %s128, 1
          %s1152 = scalar_lea.vmem [#allocation5], %s1151
          %1153 = dma.done %s1150, 16
        $region56: #{tpu_custom_call.1} parent=47 // pred_fallthru
          _
        // Predicated region
        $region57: #{tpu_custom_call.1} parent=47 // pred_check
          %p1154 = pneg %p171
        $region58: #{tpu_custom_call.1} parent=47 // pred_check_branch
          %1156 = sbr.rel (%p1154) target = $region60
        $region59: #{tpu_custom_call.1} parent=47 // pred_region
          %s1157 = sand.u32 %s156, 1
          %s1158 = scalar_lea.sflag [#allocation7], %s1157
          %s1159 = sand.u32 %s156, 1
          %s1160 = scalar_lea.vmem [#allocation6], %s1159
          %1161 = dma.done %s1158, 16
        $region60: #{tpu_custom_call.1} parent=47 // pred_fallthru
          _
      $region48: #{tpu_custom_call.1} parent=5 // pred_fallthru
        _
    $region6: #{tpu_custom_call.1} parent=1 // loop_footer
      %s24 = sadd.s32 1, %s20
    $region7: #{tpu_custom_call.1} parent=1 // loop_footer_branch
      %19 = sbr.rel target = $region3
    $region8: #{tpu_custom_call.1} parent=1 // loop_exit
      _
    %1162 = vsyncpa [#allocation3], 1
    %s1163 = scalar_lea.sflag [#allocation3], 1
    %1164 = vsyncpa %s1163, 1
    %1165 = vsyncpa [#allocation4], 1
    %s1166 = scalar_lea.sflag [#allocation4], 1
    %1167 = vsyncpa %s1166, 1
    %1168 = vsyncpa [#allocation7], 1
    %s1169 = scalar_lea.sflag [#allocation7], 1
    %1170 = vsyncpa %s1169, 1

</llo_original>
